<compile_context>
chip_gen: v7x
topology: tpu7x:2x2x1
jax: 0.10.0
libtpu: 0.0.40
codegen_flags: <defaults>
</compile_context>

<pallas_src>
import functools

import jax
import jax.numpy as jnp
from jax.experimental import pallas as pl
from jax.experimental.pallas import tpu as pltpu


def _pick_tile(dim, quantum, target):
    """Largest t <= target with t % quantum == 0 and dim % t == 0.

    Falls back to the full dimension (a block dim equal to the array dim is
    always legal and exempt from the (8, 128) divisibility rule).
    """
    if dim <= target:
        return dim
    t = (target // quantum) * quantum
    while t >= quantum:
        if dim % t == 0:
            return t
        t -= quantum
    return dim


def _squeeze1d_kernel(x_ref, o_ref, *, r):
    # x_ref block: (1, TC, TL*r)  -- contiguous input rows (contiguous DMA)
    # o_ref block: (1, TC*r, TL)  -- lane-dense output rows
    x = x_ref[0]                                   # (TC, TL*r)
    tc, lin = x.shape
    tl = lin // r
    # Vectorized block-level de-interleave:
    #   y[c, k, l] = x[c, l*r + k]   ->   o[c*r + k, l]
    y = jnp.swapaxes(x.reshape(tc, tl, r), 1, 2)   # (TC, r, TL)
    o_ref[0] = y.reshape(tc * r, tl)


def squeeze1d_pallas(x, downscale_factor=2, *, tc_target=64, tl_target=512):
    """[B, C, L] -> [B, C*r, L//r] via a tiled Pallas kernel."""
    B, C, L = x.shape
    r = int(downscale_factor)
    if L % r != 0:
        raise ValueError("length must be divisible by downscale_factor")
    if r == 1:
        return x
    out_len = L // r
    Co = C * r

    tc = _pick_tile(C, 8, tc_target)          # second-minor dim: multiple of 8 or full
    tl = _pick_tile(out_len, 128, tl_target)  # minor dim: multiple of 128 or full
    grid = (B, C // tc, out_len // tl)

    kernel = functools.partial(_squeeze1d_kernel, r=r)
    bytes_accessed = 2 * x.size * x.dtype.itemsize  # pure-bandwidth op

    return pl.pallas_call(
        kernel,
        out_shape=jax.ShapeDtypeStruct((B, Co, out_len), x.dtype),
        grid=grid,
        in_specs=[pl.BlockSpec((1, tc, tl * r), lambda b, ci, li: (b, ci, li))],
        out_specs=pl.BlockSpec((1, tc * r, tl), lambda b, ci, li: (b, ci, li)),
        compiler_params=pltpu.CompilerParams(
            dimension_semantics=("parallel", "parallel", "parallel"),
            vmem_limit_bytes=32 * 1024 * 1024,
        ),
        cost_estimate=pl.CostEstimate(
            flops=0, transcendentals=0, bytes_accessed=bytes_accessed),
    )(x)


def unsqueeze1d_jax(y, upscale_factor=2):
    """Pure-JAX inverse: [B, C*r, L] -> [B, C, L*r] (trivial relayout)."""
    B, Cr, L = y.shape
    r = upscale_factor
    C = Cr // r
    yv = y.reshape(B, C, r, L)
    return jnp.transpose(yv, (0, 1, 3, 2)).reshape(B, C, L * r)


class SqueezeLayer1d:
    """JAX/Pallas port of the PyTorch SqueezeLayer1d (forward in Pallas)."""

    def __init__(self, downscale_factor):
        self.downscale_factor = downscale_factor

    def forward(self, x, logpx=None):
        squeeze_x = squeeze1d_pallas(x, self.downscale_factor)
        if logpx is None:
            return squeeze_x
        return squeeze_x, logpx

    def inverse(self, y, logpy=None):
        unsqueeze_y = unsqueeze1d_jax(y, self.downscale_factor)
        if logpy is None:
            return unsqueeze_y
        return unsqueeze_y, logpy

    __call__ = forward


def _squeeze1d_ref(x, r=2):
    # pure-JAX reference (mirrors the PyTorch reshape/permute/reshape)
    B, C, L = x.shape
    out_len = L // r
    xv = x.reshape(B, C, out_len, r)
    return jnp.transpose(xv, (0, 1, 3, 2)).reshape(B, C * r, out_len)


if __name__ == "__main__":
    key = jax.random.PRNGKey(0)
    k1, k2 = jax.random.split(key)

    # small shapes consistent with the module
    B, C, L, r = 2, 4, 16, 2
    x = jax.random.normal(k1, (B, C, L), dtype=jnp.float32)

    layer = SqueezeLayer1d(downscale_factor=r)

    # forward without logpx
    y = jax.block_until_ready(layer(x))
    assert y.shape == (B, C * r, L // r)
    assert y.dtype == x.dtype
    assert jnp.array_equal(y, _squeeze1d_ref(x, r)), "Pallas output mismatch vs reference"

    # forward with logpx (passthrough semantics)
    y2, lp = layer(x, logpx=jnp.zeros((B, 1), jnp.float32))
    jax.block_until_ready(y2)
    assert jnp.array_equal(y2, y)
    assert lp.shape == (B, 1)

    # second case exercising the multi-tile (channel x length) grid path
    B2, C2, L2 = 2, 80, 1536
    xb = jax.random.normal(k2, (B2, C2, L2), dtype=jnp.float32)
    yb = jax.block_until_ready(squeeze1d_pallas(xb, 2))
    assert jnp.array_equal(yb, _squeeze1d_ref(xb, 2)), "mismatch vs reference (tiled path)"

    # inverse round-trip (pure JAX helper)
    xr = layer.inverse(y)
    assert jnp.array_equal(xr, x)

    print("KERNEL_OK")
</pallas_src>

<mosaic_0001>
module attributes {stable_mosaic.version = 11 : i64} {
  func.func @_squeeze1d_kernel(%arg0: i32, %arg1: i32, %arg2: i32, %arg3: memref<1x4x16xf32, #tpu.memory_space<vmem>>, %arg4: memref<1x8x8xf32, #tpu.memory_space<vmem>>) attributes {dimension_semantics = [#tpu.dimension_semantics<parallel>, #tpu.dimension_semantics<parallel>, #tpu.dimension_semantics<parallel>], iteration_bounds = array<i64: 2, 1, 1>, scalar_prefetch = 0 : i64, scratch_operands = 0 : i64, tpu.core_type = #tpu.core_type<tc>, window_params = [{transform_indices = @transform_0, window_bounds = array<i64: 1, 4, 16>}, {transform_indices = @transform_1, window_bounds = array<i64: 1, 8, 8>}]} {
    %c0 = arith.constant 0 : index
    %c0_0 = arith.constant 0 : index
    %c0_1 = arith.constant 0 : index
    %0 = vector.load %arg3[%c0, %c0_0, %c0_1] : memref<1x4x16xf32, #tpu.memory_space<vmem>>, vector<1x4x16xf32>
    %1 = vector.shape_cast %0 : vector<1x4x16xf32> to vector<4x16xf32>
    %2 = vector.shape_cast %1 : vector<4x16xf32> to vector<4x8x2xf32>
    %3 = tpu.transpose %2, [0, 2, 1] : vector<4x8x2xf32> -> vector<4x2x8xf32>
    %4 = vector.shape_cast %3 : vector<4x2x8xf32> to vector<8x8xf32>
    %c0_2 = arith.constant 0 : index
    %c0_3 = arith.constant 0 : index
    %c0_4 = arith.constant 0 : index
    %5 = vector.load %arg4[%c0_2, %c0_3, %c0_4] : memref<1x8x8xf32, #tpu.memory_space<vmem>>, vector<1x8x8xf32>
    %6 = vector.shape_cast %5 : vector<1x8x8xf32> to vector<8x8xf32>
    %7 = vector.shape_cast %4 : vector<8x8xf32> to vector<1x8x8xf32>
    tpu.vector_store %arg4[%c0_2, %c0_3, %c0_4], %7 {strides = array<i32>} : memref<1x8x8xf32, #tpu.memory_space<vmem>>, vector<1x8x8xf32>,
    return
  }
  func.func @transform_0(%arg0: i32, %arg1: i32, %arg2: i32) -> (i32, i32, i32) {
    %c0_i32 = arith.constant 0 : i32
    return %arg0, %arg1, %arg2 : i32, i32, i32
  }
  func.func @transform_1(%arg0: i32, %arg1: i32, %arg2: i32) -> (i32, i32, i32) {
    %c0_i32 = arith.constant 0 : i32
    return %arg0, %arg1, %arg2 : i32, i32, i32
  }
}

</mosaic_0001>

<llo_original>
// kernel: tpu_custom_call.1
$region0: #{tpu_custom_call.1}
  #allocation0 [shape = 'u32[]', space=smem, size = 0x4, offset = 0x4, fixed_abs, tag = 'smem constant byte address 0x4 - core index']
  #allocation1 [shape = 'u32[144,128]{1,0:T(1,128)}', space=vmem, size = 0x12000, scoped, tag = 'internal scratch']
  %s0 = inlined_call_operand.hbm [shape: f32[2,4,16], index: 0, kind: input, shape index: {}]
  %s1 = inlined_call_operand.hbm [shape: f32[2,8,8], index: 1, kind: output, shape index: {}]
  %s2 = sld [smem:[#allocation0]]
  $region41: #{tpu_custom_call.1} parent=0
    _
  %s4 = ssub.s32 1, %s2
  %s5 = scalar_select 0, %s4, %s2
  $region1: #{tpu_custom_call.1} parent=0
    #allocation2 [shape = 'u8[4096]{0}', space=vmem, size = 0x1000, scoped, tag = 'input window, operand 0']
    #allocation3 [shape = 's32[2]{0}', space=sflag, size = 0x8, scoped, tag = 'scoped memory for tpu_custom_call.1']
    #allocation4 [shape = 's32[2]{0}', space=sflag, size = 0x8, scoped, tag = 'scoped memory for tpu_custom_call.1']
    #allocation5 [shape = 'u8[8192]{0}', space=vmem, size = 0x2000, scoped, tag = 'output window, operand 0']
    %6 = vsyncpa [#allocation3], 0
    %s7 = scalar_lea.sflag [#allocation3], 1
    %8 = vsyncpa %s7, 0
    %9 = vsyncpa [#allocation4], 0
    %s10 = scalar_lea.sflag [#allocation4], 1
    %11 = vsyncpa %s10, 0
    loop: start=0, step=1, limit=4
    $region2: #{tpu_custom_call.1} parent=1 // loop_pre_header
      _
    $region3: #{tpu_custom_call.1} parent=1 // loop_header
      %s13 = sphi 0, %s17
      %p14 = scmp.ge.s32.totalorder %s13, 4
      %s20 = sphi 0, %s39
      %s21 = sphi 0, %s35
      %s22 = sphi 0, %s31
      %s23 = sphi 0, %s20
      %s24 = sphi 0, %s21
      %s25 = sphi 0, %s22
      %s26 = sphi 0, %s23
      %s27 = sphi 0, %s24
      %s28 = sphi 0, %s25
      %s46 = sphi 0, %s48
      %s49 = sphi 0, %s46
      %s50 = sphi 0, %s49
      %s66 = sphi 0, %s50
      %s76 = sphi 0, %s78
      %s79 = sphi 0, %s76
      %s80 = sphi 0, %s79
      %s96 = sphi 0, %s80
    $region4: #{tpu_custom_call.1} parent=1 // loop_header_branch
      %16 = sbr.rel (%p14) target = $region8
    $region5: #{tpu_custom_call.1} parent=1 // loop_body
      %s18 = ssub.s32 %s13, 1
      %s19 = ssub.s32 %s13, 2
      %s29 = sadd.s32 1, %s22
      %p30 = scmp.ge.s32.totalorder %s29, 1
      %s31 = scalar_select %p30, 0, %s29
      %s32 = sadd.s32 1, %s21
      %s33 = scalar_select %p30, %s32, %s21
      %p34 = scmp.ge.s32.totalorder %s33, 1
      %s35 = scalar_select %p34, 0, %s33
      %s36 = sadd.s32 1, %s20
      %s37 = scalar_select %p34, %s36, %s20
      %p38 = scmp.ge.s32.totalorder %s37, 2
      %s39 = scalar_select %p38, 0, %s37
      %s40 = ssub.s32 %s20, %s39
      %s41 = ssub.s32 %s21, %s35
      %s42 = sor.u32 %s40, %s41
      %s43 = ssub.s32 %s22, %s31
      %s44 = sor.u32 %s42, %s43
      %p45 = scmp.eq.s32.totalorder %s44, 0
      %s47 = sadd.s32 %s46, 1
      %s48 = scalar_select %p45, %s46, %s47
      %p51 = pneg %p45
      %p52 = scmp.eq.s32.totalorder %s13, 1
      %p53 = por %p51, %p52
      %p54 = scmp.ne.s32.totalorder %s46, %s49
      %p55 = scmp.eq.s32.totalorder %s13, 0
      %p56 = por %p54, %p55
      %p57 = scmp.ne.s32.totalorder %s46, %s49
      %p58 = scmp.eq.s32.totalorder %s18, 1
      %p59 = por %p57, %p58
      %p60 = scmp.ne.s32.totalorder %s49, %s50
      %p61 = scmp.eq.s32.totalorder %s18, 0
      %p62 = por %p60, %p61
      %p63 = scmp.ne.s32.totalorder %s49, %s50
      %p64 = scmp.eq.s32.totalorder %s19, 1
      %p65 = por %p63, %p64
      %p67 = scmp.ne.s32.totalorder %s50, %s66
      %p68 = scmp.eq.s32.totalorder %s19, 0
      %p69 = por %p67, %p68
      %s70 = ssub.s32 %s20, %s39
      %s71 = ssub.s32 %s21, %s35
      %s72 = sor.u32 %s70, %s71
      %s73 = ssub.s32 %s22, %s31
      %s74 = sor.u32 %s72, %s73
      %p75 = scmp.eq.s32.totalorder %s74, 0
      %s77 = sadd.s32 %s76, 1
      %s78 = scalar_select %p75, %s76, %s77
      %p81 = pneg %p75
      %p82 = scmp.eq.s32.totalorder %s13, 1
      %p83 = por %p81, %p82
      %p84 = scmp.ne.s32.totalorder %s76, %s79
      %p85 = scmp.eq.s32.totalorder %s13, 0
      %p86 = por %p84, %p85
      %p87 = scmp.ne.s32.totalorder %s76, %s79
      %p88 = scmp.eq.s32.totalorder %s18, 1
      %p89 = por %p87, %p88
      %p90 = scmp.ne.s32.totalorder %s79, %s80
      %p91 = scmp.eq.s32.totalorder %s18, 0
      %p92 = por %p90, %p91
      %p93 = scmp.ne.s32.totalorder %s79, %s80
      %p94 = scmp.eq.s32.totalorder %s19, 1
      %p95 = por %p93, %p94
      %p97 = scmp.ne.s32.totalorder %s80, %s96
      %p98 = scmp.eq.s32.totalorder %s19, 0
      %p99 = por %p97, %p98
      %p100 = scmp.le.s32.totalorder 1, %s13
      %p101 = scmp.lt.s32.totalorder %s13, 3
      %p102 = pnand %p100, %p101
      %p103 = pneg %p102
      // Predicated region
      $region9: #{tpu_custom_call.1} parent=5 // pred_check
        _
      $region10: #{tpu_custom_call.1} parent=5 // pred_check_branch
        %105 = sbr.rel (%p102) target = $region12
      $region11: #{tpu_custom_call.1} parent=5 // pred_region
        %s106 = ssub.s32 %s13, 1
      $region12: #{tpu_custom_call.1} parent=5 // pred_fallthru
        _
      %p107 = scmp.lt.s32.totalorder %s13, 2
      // Predicated region
      $region13: #{tpu_custom_call.1} parent=5 // pred_check
        %p108 = pneg %p107
      $region14: #{tpu_custom_call.1} parent=5 // pred_check_branch
        %110 = sbr.rel (%p108) target = $region16
      $region15: #{tpu_custom_call.1} parent=5 // pred_region
        // Predicated region
        $region17: #{tpu_custom_call.1} parent=15 // pred_check
          %p111 = pneg %p56
        $region18: #{tpu_custom_call.1} parent=15 // pred_check_branch
          %113 = sbr.rel (%p111) target = $region20
        $region19: #{tpu_custom_call.1} parent=15 // pred_region
          %s114 = sand.u32 %s46, 1
          %s115 = scalar_lea.sflag [#allocation3], %s114
          %s116 = sand.u32 %s46, 1
          %s117 = smul.addr %s116, 4
          %s118 = scalar_lea.vmem [#allocation2], %s117
          %s120 = ssub.s32 64, 64
          %121 = vsyncadd %s115, %s120
          %s122 = sadd.s32 %s22, %s21
          %s123 = sadd.s32 %s122, %s20
          %s124 = smul.addr %s123, 64
          %s125 = scalar_lea.hbm %s0, %s124
          %s127 = sshll.u32 %s118, 4
          %s128 = int_to_ptr.vmem [resolvable:$true] %s127
          %130 = dma.hbm_to_vmem [thread:$0]  %s125, 64, %s128, %s115
        $region20: #{tpu_custom_call.1} parent=15 // pred_fallthru
          _
      $region16: #{tpu_custom_call.1} parent=5 // pred_fallthru
        _
      %p131 = scmp.le.s32.totalorder 1, %s13
      %p132 = scmp.lt.s32.totalorder %s13, 3
      %p133 = pnand %p131, %p132
      %p134 = pneg %p133
      // Predicated region
      $region21: #{tpu_custom_call.1} parent=5 // pred_check
        _
      $region22: #{tpu_custom_call.1} parent=5 // pred_check_branch
        %136 = sbr.rel (%p133) target = $region24
      $region23: #{tpu_custom_call.1} parent=5 // pred_region
        %s137 = ssub.s32 %s13, 1
        %s138 = sand.u32 %s49, 1
        %s139 = scalar_lea.sflag [#allocation3], %s138
        %s140 = sand.u32 %s49, 1
        %s141 = smul.addr %s140, 4
        %s142 = scalar_lea.vmem [#allocation2], %s141
        // Predicated region
        $region25: #{tpu_custom_call.1} parent=23 // pred_check
          %p143 = pneg %p62
        $region26: #{tpu_custom_call.1} parent=23 // pred_check_branch
          %145 = sbr.rel (%p143) target = $region28
        $region27: #{tpu_custom_call.1} parent=23 // pred_region
          %146 = dma.done %s139, 64
        $region28: #{tpu_custom_call.1} parent=23 // pred_fallthru
          _
        %s147 = sand.u32 %s49, 1
        %s148 = scalar_lea.sflag [#allocation3], %s147
        %s149 = sand.u32 %s49, 1
        %s150 = smul.addr %s149, 4
        %s151 = scalar_lea.vmem [#allocation2], %s150
        %p152 = pneg %p62
        %p153 = pneg %p59
        %p154 = pneg %p92
        %p155 = pneg %p89
        %s156 = sand.u32 %s79, 1
        %s157 = scalar_lea.sflag [#allocation4], %s156
        %s158 = sand.u32 %s79, 1
        %s159 = smul.addr %s158, 8
        %s160 = scalar_lea.vmem [#allocation5], %s159
        %v161 = vld [vmem:[%s142] sm:$0xf]
        %163 = vrot.lane.b32.xlu0 %v161, 126
        %v164 = vpop.permute.xlu0 %163
        %166 = vrot.lane.b32.xlu0 %v161, 124
        %v167 = vpop.permute.xlu0 %166
        %169 = vrot.lane.b32.xlu0 %v161, 122
        %v170 = vpop.permute.xlu0 %169
        %172 = vrot.lane.b32.xlu0 %v161, 120
        %v173 = vpop.permute.xlu0 %172
        %175 = vrot.lane.b32.xlu0 %v161, 118
        %v176 = vpop.permute.xlu0 %175
        %178 = vrot.lane.b32.xlu0 %v161, 116
        %v179 = vpop.permute.xlu0 %178
        %181 = vrot.lane.b32.xlu0 %v161, 114
        %v182 = vpop.permute.xlu0 %181
        %v184 = vcombine.low %v161, %v167
        %v186 = vunpack.c.l.s4 1983009808
        %v187 = vunpack.c.0.s8 %v186
        %v188 = vlaneseq
        %v189 = vshrl.u32 %v188, 7
        %v190 = vsub.s32 %v187, %v189
        %v191 = vrot.slane %v184, %v190
        %v192 = vcombine.low %v164, %v170
        %v194 = vunpack.c.l.s4 1983009808
        %v195 = vunpack.c.0.s8 %v194
        %v196 = vlaneseq
        %v197 = vshrl.u32 %v196, 7
        %v198 = vsub.s32 %v195, %v197
        %v199 = vrot.slane %v192, %v198
        %v200 = vcombine.low %v173, %v179
        %v202 = vunpack.c.l.s4 1983009808
        %v203 = vunpack.c.0.s8 %v202
        %v204 = vlaneseq
        %v205 = vshrl.u32 %v204, 7
        %v206 = vsub.s32 %v203, %v205
        %v207 = vrot.slane %v200, %v206
        %v208 = vcombine.low %v176, %v182
        %v210 = vunpack.c.l.s4 1983009808
        %v211 = vunpack.c.0.s8 %v210
        %v212 = vlaneseq
        %v213 = vshrl.u32 %v212, 7
        %v214 = vsub.s32 %v211, %v213
        %v215 = vrot.slane %v208, %v214
        %v216 = vcombine.low %v191, %v199
        %v217 = vcombine.high %v191, %v199
        %v219 = vunpack.c.l.s4 1934713408
        %v220 = vunpack.c.0.s8 %v219
        %v221 = vlaneseq
        %v222 = vshrl.u32 %v221, 7
        %v223 = vsub.s32 %v220, %v222
        %v224 = vrot.slane %v216, %v223
        %v226 = vunpack.c.l.s4 1934713408
        %v227 = vunpack.c.0.s8 %v226
        %v228 = vlaneseq
        %v229 = vshrl.u32 %v228, 7
        %v230 = vsub.s32 %v227, %v229
        %v231 = vrot.slane %v217, %v230
        %v232 = vcombine.low %v207, %v215
        %v233 = vcombine.high %v207, %v215
        %v235 = vunpack.c.l.s4 1934713408
        %v236 = vunpack.c.0.s8 %v235
        %v237 = vlaneseq
        %v238 = vshrl.u32 %v237, 7
        %v239 = vsub.s32 %v236, %v238
        %v240 = vrot.slane %v232, %v239
        %v242 = vunpack.c.l.s4 1934713408
        %v243 = vunpack.c.0.s8 %v242
        %v244 = vlaneseq
        %v245 = vshrl.u32 %v244, 7
        %v246 = vsub.s32 %v243, %v245
        %v247 = vrot.slane %v233, %v246
        %v248 = vcombine.low %v224, %v240
        %v249 = vcombine.high %v224, %v240
        %v250 = vcombine.low %v231, %v247
        %v251 = vcombine.high %v231, %v247
        %252 = vxpose.xlu0.b32.start [1/16] %v248, 128
        %253 = vxpose.xlu0.b32.cont [2/16] 0.0, 128
        %254 = vxpose.xlu0.b32.cont [3/16] 0.0, 128
        %255 = vxpose.xlu0.b32.cont [4/16] 0.0, 128
        %256 = vxpose.xlu0.b32.cont [5/16] 0.0, 128
        %257 = vxpose.xlu0.b32.cont [6/16] 0.0, 128
        %258 = vxpose.xlu0.b32.cont [7/16] 0.0, 128
        %259 = vxpose.xlu0.b32.cont [8/16] 0.0, 128
        %260 = vxpose.xlu0.b32.cont [9/16] 0.0, 128
        %261 = vxpose.xlu0.b32.cont [10/16] 0.0, 128
        %262 = vxpose.xlu0.b32.cont [11/16] 0.0, 128
        %263 = vxpose.xlu0.b32.cont [12/16] 0.0, 128
        %264 = vxpose.xlu0.b32.cont [13/16] 0.0, 128
        %265 = vxpose.xlu0.b32.cont [14/16] 0.0, 128
        %266 = vxpose.xlu0.b32.cont [15/16] 0.0, 128
        %267 = vxpose.xlu0.b32.end [16/16] 0.0, 128
        %v268 = vpop.trf.xlu0
        %v269 = vpop.trf.xlu0
        %v270 = vpop.trf.xlu0
        %v271 = vpop.trf.xlu0
        %v272 = vpop.trf.xlu0
        %v273 = vpop.trf.xlu0
        %v274 = vpop.trf.xlu0
        %v275 = vpop.trf.xlu0
        %v276 = vpop.trf.xlu0
        %v277 = vpop.trf.xlu0
        %v278 = vpop.trf.xlu0
        %v279 = vpop.trf.xlu0
        %v280 = vpop.trf.xlu0
        %v281 = vpop.trf.xlu0
        %v282 = vpop.trf.xlu0
        %v283 = vpop.trf.xlu0
        %284 = vxpose.xlu0.b32.start [1/16] %v249, 128
        %285 = vxpose.xlu0.b32.cont [2/16] 0.0, 128
        %286 = vxpose.xlu0.b32.cont [3/16] 0.0, 128
        %287 = vxpose.xlu0.b32.cont [4/16] 0.0, 128
        %288 = vxpose.xlu0.b32.cont [5/16] 0.0, 128
        %289 = vxpose.xlu0.b32.cont [6/16] 0.0, 128
        %290 = vxpose.xlu0.b32.cont [7/16] 0.0, 128
        %291 = vxpose.xlu0.b32.cont [8/16] 0.0, 128
        %292 = vxpose.xlu0.b32.cont [9/16] 0.0, 128
        %293 = vxpose.xlu0.b32.cont [10/16] 0.0, 128
        %294 = vxpose.xlu0.b32.cont [11/16] 0.0, 128
        %295 = vxpose.xlu0.b32.cont [12/16] 0.0, 128
        %296 = vxpose.xlu0.b32.cont [13/16] 0.0, 128
        %297 = vxpose.xlu0.b32.cont [14/16] 0.0, 128
        %298 = vxpose.xlu0.b32.cont [15/16] 0.0, 128
        %299 = vxpose.xlu0.b32.end [16/16] 0.0, 128
        %v300 = vpop.trf.xlu0
        %v301 = vpop.trf.xlu0
        %v302 = vpop.trf.xlu0
        %v303 = vpop.trf.xlu0
        %v304 = vpop.trf.xlu0
        %v305 = vpop.trf.xlu0
        %v306 = vpop.trf.xlu0
        %v307 = vpop.trf.xlu0
        %v308 = vpop.trf.xlu0
        %v309 = vpop.trf.xlu0
        %v310 = vpop.trf.xlu0
        %v311 = vpop.trf.xlu0
        %v312 = vpop.trf.xlu0
        %v313 = vpop.trf.xlu0
        %v314 = vpop.trf.xlu0
        %v315 = vpop.trf.xlu0
        %316 = vxpose.xlu0.b32.start [1/16] %v250, 128
        %317 = vxpose.xlu0.b32.cont [2/16] 0.0, 128
        %318 = vxpose.xlu0.b32.cont [3/16] 0.0, 128
        %319 = vxpose.xlu0.b32.cont [4/16] 0.0, 128
        %320 = vxpose.xlu0.b32.cont [5/16] 0.0, 128
        %321 = vxpose.xlu0.b32.cont [6/16] 0.0, 128
        %322 = vxpose.xlu0.b32.cont [7/16] 0.0, 128
        %323 = vxpose.xlu0.b32.cont [8/16] 0.0, 128
        %324 = vxpose.xlu0.b32.cont [9/16] 0.0, 128
        %325 = vxpose.xlu0.b32.cont [10/16] 0.0, 128
        %326 = vxpose.xlu0.b32.cont [11/16] 0.0, 128
        %327 = vxpose.xlu0.b32.cont [12/16] 0.0, 128
        %328 = vxpose.xlu0.b32.cont [13/16] 0.0, 128
        %329 = vxpose.xlu0.b32.cont [14/16] 0.0, 128
        %330 = vxpose.xlu0.b32.cont [15/16] 0.0, 128
        %331 = vxpose.xlu0.b32.end [16/16] 0.0, 128
        %v332 = vpop.trf.xlu0
        %v333 = vpop.trf.xlu0
        %v334 = vpop.trf.xlu0
        %v335 = vpop.trf.xlu0
        %v336 = vpop.trf.xlu0
        %v337 = vpop.trf.xlu0
        %v338 = vpop.trf.xlu0
        %v339 = vpop.trf.xlu0
        %v340 = vpop.trf.xlu0
        %v341 = vpop.trf.xlu0
        %v342 = vpop.trf.xlu0
        %v343 = vpop.trf.xlu0
        %v344 = vpop.trf.xlu0
        %v345 = vpop.trf.xlu0
        %v346 = vpop.trf.xlu0
        %v347 = vpop.trf.xlu0
        %348 = vxpose.xlu0.b32.start [1/16] %v251, 128
        %349 = vxpose.xlu0.b32.cont [2/16] 0.0, 128
        %350 = vxpose.xlu0.b32.cont [3/16] 0.0, 128
        %351 = vxpose.xlu0.b32.cont [4/16] 0.0, 128
        %352 = vxpose.xlu0.b32.cont [5/16] 0.0, 128
        %353 = vxpose.xlu0.b32.cont [6/16] 0.0, 128
        %354 = vxpose.xlu0.b32.cont [7/16] 0.0, 128
        %355 = vxpose.xlu0.b32.cont [8/16] 0.0, 128
        %356 = vxpose.xlu0.b32.cont [9/16] 0.0, 128
        %357 = vxpose.xlu0.b32.cont [10/16] 0.0, 128
        %358 = vxpose.xlu0.b32.cont [11/16] 0.0, 128
        %359 = vxpose.xlu0.b32.cont [12/16] 0.0, 128
        %360 = vxpose.xlu0.b32.cont [13/16] 0.0, 128
        %361 = vxpose.xlu0.b32.cont [14/16] 0.0, 128
        %362 = vxpose.xlu0.b32.cont [15/16] 0.0, 128
        %363 = vxpose.xlu0.b32.end [16/16] 0.0, 128
        %v364 = vpop.trf.xlu0
        %v365 = vpop.trf.xlu0
        %v366 = vpop.trf.xlu0
        %v367 = vpop.trf.xlu0
        %v368 = vpop.trf.xlu0
        %v369 = vpop.trf.xlu0
        %v370 = vpop.trf.xlu0
        %v371 = vpop.trf.xlu0
        %v372 = vpop.trf.xlu0
        %v373 = vpop.trf.xlu0
        %v374 = vpop.trf.xlu0
        %v375 = vpop.trf.xlu0
        %v376 = vpop.trf.xlu0
        %v377 = vpop.trf.xlu0
        %v378 = vpop.trf.xlu0
        %v379 = vpop.trf.xlu0
        %v384 = vcombine.low %v268, %v300
        %v385 = vcombine.low %v332, %v364
        %v387 = vunpack.c.l.s4 1983009808
        %v388 = vunpack.c.0.s8 %v387
        %v389 = vlaneseq
        %v390 = vshrl.u32 %v389, 7
        %v391 = vsub.s32 %v388, %v390
        %v392 = vrot.slane %v384, %v391
        %v394 = vunpack.c.l.s4 1983009808
        %v395 = vunpack.c.0.s8 %v394
        %v396 = vlaneseq
        %v397 = vshrl.u32 %v396, 7
        %v398 = vsub.s32 %v395, %v397
        %v399 = vrot.slane %v385, %v398
        %v400 = vcombine.low %v392, %v399
        %vm402 = vcmask 64512
        %403 = vst.msk [vmem:[%s160] sm:$0xff] %vm402, %v400
        %s404 = sand.u32 %s79, 1
        %s405 = scalar_lea.sflag [#allocation4], %s404
        %s406 = sand.u32 %s79, 1
        %s407 = smul.addr %s406, 8
        %s408 = scalar_lea.vmem [#allocation5], %s407
        // Predicated region
        $region29: #{tpu_custom_call.1} parent=23 // pred_check
          %p409 = pneg %p89
        $region30: #{tpu_custom_call.1} parent=23 // pred_check_branch
          %411 = sbr.rel (%p409) target = $region32
        $region31: #{tpu_custom_call.1} parent=23 // pred_region
          %s413 = ssub.s32 128, 128
          %414 = vsyncadd %s405, %s413
          %s415 = sadd.s32 %s25, %s24
          %s416 = sadd.s32 %s415, %s23
          %s417 = smul.addr %s416, 128
          %s418 = scalar_lea.hbm %s1, %s417
          %s420 = sshll.u32 %s408, 4
          %s421 = int_to_ptr.vmem [resolvable:$true] %s420
          %423 = dma.vmem_to_hbm [thread:$0]  %s421, 128, %s418, %s405
        $region32: #{tpu_custom_call.1} parent=23 // pred_fallthru
          _
      $region24: #{tpu_custom_call.1} parent=5 // pred_fallthru
        _
      %p424 = scmp.le.s32.totalorder 2, %s13
      // Predicated region
      $region33: #{tpu_custom_call.1} parent=5 // pred_check
        %p425 = pneg %p424
      $region34: #{tpu_custom_call.1} parent=5 // pred_check_branch
        %427 = sbr.rel (%p425) target = $region36
      $region35: #{tpu_custom_call.1} parent=5 // pred_region
        %s428 = ssub.s32 %s13, 2
        // Predicated region
        $region37: #{tpu_custom_call.1} parent=35 // pred_check
          %p429 = pneg %p95
        $region38: #{tpu_custom_call.1} parent=35 // pred_check_branch
          %431 = sbr.rel (%p429) target = $region40
        $region39: #{tpu_custom_call.1} parent=35 // pred_region
          %s432 = sand.u32 %s80, 1
          %s433 = scalar_lea.sflag [#allocation4], %s432
          %s434 = sand.u32 %s80, 1
          %s435 = smul.addr %s434, 8
          %s436 = scalar_lea.vmem [#allocation5], %s435
          %437 = dma.done %s433, 128
        $region40: #{tpu_custom_call.1} parent=35 // pred_fallthru
          _
      $region36: #{tpu_custom_call.1} parent=5 // pred_fallthru
        _
    $region6: #{tpu_custom_call.1} parent=1 // loop_footer
      %s17 = sadd.s32 1, %s13
    $region7: #{tpu_custom_call.1} parent=1 // loop_footer_branch
      %12 = sbr.rel target = $region3
    $region8: #{tpu_custom_call.1} parent=1 // loop_exit
      _
    %438 = vsyncpa [#allocation3], 1
    %s439 = scalar_lea.sflag [#allocation3], 1
    %440 = vsyncpa %s439, 1
    %441 = vsyncpa [#allocation4], 1
    %s442 = scalar_lea.sflag [#allocation4], 1
    %443 = vsyncpa %s442, 1

</llo_original>
